<compile_context>
chip_gen: v7x
topology: tpu7x:2x2x1
jax: 0.10.0
libtpu: 0.0.40
codegen_flags: <defaults>
</compile_context>

<pallas_src>
import functools

import jax
import jax.numpy as jnp
from jax.experimental import pallas as pl
from jax.experimental.pallas import tpu as pltpu


def _round_up(n, m):
    return ((n + m - 1) // m) * m


def _tpu_generation():
    """Best-effort TPU generation detection; None on CPU/interpret/unknown."""
    try:
        kind = jax.devices()[0].device_kind.lower()
    except Exception:
        return None
    if "v5 lite" in kind or "v5e" in kind or "v5litepod" in kind:
        return "v5e"
    if "v6" in kind or "trillium" in kind:
        return "v6e"
    if "v7" in kind:
        return "v7x"
    return None


def _default_batch_tile(batch):
    gen = _tpu_generation()
    # v5e: 128x128 MXU -> M=256 buys nothing but doubles VMEM footprint.
    # v6e: 256-wide MXU -> 256.  v7x: 64 MiB VMEM + 2 TensorCores -> 128.
    base = {"v5e": 128, "v6e": 256, "v7x": 128}.get(gen, 128)
    tb = min(base, _round_up(max(batch, 1), 8))
    if gen == "v7x":
        # Ensure >= 2 grid steps so dimension_semantics=("parallel",) can
        # actually shard the batch across both TensorCores.
        while tb > 8 and _round_up(batch, tb) // tb < 2:
            tb = _round_up(tb // 2, 8)
    return tb


def _vmem_limit_bytes():
    # v7x has 64 MiB physical VMEM per TensorCore; v5e/v6e have 128 MiB.
    gen = _tpu_generation()
    return (32 << 20) if gen in (None, "v7x") else (64 << 20)


def fasttext_kernel(x_ref, w1_ref, b1_ref, w2_ref, b2_ref, o_ref):
    # fc1 on the MXU: bf16 operands, f32 accumulation; bias add in f32.
    h = jnp.dot(x_ref[...], w1_ref[...], preferred_element_type=jnp.float32)
    h = h + b1_ref[...]                              # (TB, Hp) f32; padded cols stay 0

    # fc2: padded class columns carry a -1e9 bias -> exp underflows to exactly 0.
    z = jnp.dot(h.astype(jnp.bfloat16), w2_ref[...],
                preferred_element_type=jnp.float32)
    z = z + b2_ref[...]                              # (TB, Op) f32

    # Numerically-stable softmax over the class (lane) axis, all in f32.
    # Exact division (not the approx reciprocal) so rows sum to 1 exactly.
    z_max = jnp.max(z, axis=-1, keepdims=True)
    e = jnp.exp(z - z_max)
    o_ref[...] = (e / jnp.sum(e, axis=-1, keepdims=True)).astype(o_ref.dtype)


def prepare_params(w1, b1, w2, b2):
    """One-time prep: transpose, pad E/H/O to multiples of 128, cast weights to bf16.

    w1: (H, E), b1: (H,), w2: (O, H), b2: (O,)   (PyTorch nn.Linear layout).
    """
    H, E = w1.shape
    O = w2.shape[0]
    Ep = _round_up(E, 128)
    Hp = _round_up(H, 128)
    Op = _round_up(O, 128)

    w1_t = jnp.zeros((Ep, Hp), jnp.bfloat16).at[:E, :H].set(
        jnp.transpose(w1).astype(jnp.bfloat16))
    b1_p = jnp.zeros((1, Hp), jnp.float32).at[0, :H].set(b1.astype(jnp.float32))

    w2_t = jnp.zeros((Hp, Op), jnp.bfloat16).at[:H, :O].set(
        jnp.transpose(w2).astype(jnp.bfloat16))
    # Padded class columns get a large negative bias -> softmax prob exactly 0.
    b2_p = jnp.full((1, Op), -1e9, jnp.float32).at[0, :O].set(
        b2.astype(jnp.float32))

    return w1_t, b1_p, w2_t, b2_p, O


@functools.partial(jax.jit,
                   static_argnames=("out_size", "tb", "single_buffer_weights"))
def _fasttext_forward_impl(x, w1_t, b1_p, w2_t, b2_p, *,
                           out_size, tb, single_buffer_weights):
    B, E = x.shape
    Ep, Hp = w1_t.shape
    Op = w2_t.shape[1]
    Bp = _round_up(B, tb)

    # Single fused pass: pad (batch + lane) and cast to bf16 together; skip
    # padding entirely when already aligned.
    if (Bp, Ep) != (B, E):
        x_in = jnp.zeros((Bp, Ep), jnp.bfloat16).at[:B, :E].set(
            x.astype(jnp.bfloat16))
    else:
        x_in = x.astype(jnp.bfloat16)

    def _resident(shape):
        # Constant index_map -> DMA'd once; single-buffer to halve VMEM held.
        if single_buffer_weights:
            return pl.BlockSpec(shape, lambda i: (0, 0),
                                pipeline_mode=pl.Buffered(1))
        return pl.BlockSpec(shape, lambda i: (0, 0))

    grid = (Bp // tb,)
    cost = pl.CostEstimate(
        flops=2 * Bp * Ep * Hp + 2 * Bp * Hp * Op,
        transcendentals=Bp * Op,
        bytes_accessed=Bp * Ep * 2 + Ep * Hp * 2 + Hp * Op * 2 + Bp * Op * 4,
    )

    out = pl.pallas_call(
        fasttext_kernel,
        out_shape=jax.ShapeDtypeStruct((Bp, Op), jnp.float32),
        grid_spec=pl.GridSpec(
            grid=grid,
            in_specs=[
                pl.BlockSpec((tb, Ep), lambda i: (i, 0)),   # x tile (pipelined)
                _resident((Ep, Hp)),                        # W1 resident
                _resident((1, Hp)),                         # b1 resident
                _resident((Hp, Op)),                        # W2 resident
                _resident((1, Op)),                         # b2 resident
            ],
            out_specs=pl.BlockSpec((tb, Op), lambda i: (i, 0)),
        ),
        compiler_params=pltpu.CompilerParams(
            dimension_semantics=("parallel",),
            vmem_limit_bytes=_vmem_limit_bytes(),
        ),
        cost_estimate=cost,
    )(x_in, w1_t, b1_p, w2_t, b2_p)

    # Strip batch / class padding (no-op copy when nothing was padded).
    if (Bp, Op) != (B, out_size):
        out = out[:B, :out_size]
    return out

# TODO(synk): for real fastText vocab sizes (O ~ 1e5+) add a second grid axis
# over Op (last, "arbitrary") with a two-pass / online-softmax accumulator so
# W2 and the (tb, Op) logits never need to be VMEM-resident (threshold ~half
# on v7x's 64 MiB vs v5e/v6e's 128 MiB).


_SINGLE_BUFFER_WEIGHTS_OK = True  # flipped off if pl.Buffered(1) is rejected


def fasttext_forward(x, w1_t, b1_p, w2_t, b2_p, *, out_size, tb=None):
    """x: (B, E) f32/bf16; prepared params from prepare_params -> (B, out_size) f32."""
    global _SINGLE_BUFFER_WEIGHTS_OK
    if tb is None:
        tb = _default_batch_tile(x.shape[0])
    if _SINGLE_BUFFER_WEIGHTS_OK:
        try:
            return jax.block_until_ready(
                _fasttext_forward_impl(x, w1_t, b1_p, w2_t, b2_p,
                                       out_size=out_size, tb=tb,
                                       single_buffer_weights=True))
        except Exception:
            # Older/alternative Pallas without pipeline_mode support: fall back
            # to default double-buffered resident weights.
            _SINGLE_BUFFER_WEIGHTS_OK = False
    return _fasttext_forward_impl(x, w1_t, b1_p, w2_t, b2_p,
                                  out_size=out_size, tb=tb,
                                  single_buffer_weights=False)


if __name__ == "__main__":
    # Small config consistent with the module: batch=8, embed=32, hidden=32, output=16
    B, E, H, O = 8, 32, 32, 16

    key = jax.random.PRNGKey(0)
    kx, k1, k2, k3, k4 = jax.random.split(key, 5)

    # Deterministic init mimicking nn.Linear uniform(-1/sqrt(fan_in), 1/sqrt(fan_in))
    x = jax.random.normal(kx, (B, E), dtype=jnp.float32)
    bound1 = 1.0 / (E ** 0.5)
    w1 = jax.random.uniform(k1, (H, E), minval=-bound1, maxval=bound1, dtype=jnp.float32)
    b1 = jax.random.uniform(k2, (H,), minval=-bound1, maxval=bound1, dtype=jnp.float32)
    bound2 = 1.0 / (H ** 0.5)
    w2 = jax.random.uniform(k3, (O, H), minval=-bound2, maxval=bound2, dtype=jnp.float32)
    b2 = jax.random.uniform(k4, (O,), minval=-bound2, maxval=bound2, dtype=jnp.float32)

    # One-time parameter preparation (transpose + pad + bf16 cast).
    w1_t, b1_p, w2_t, b2_p, out_size = prepare_params(w1, b1, w2, b2)

    out = fasttext_forward(x, w1_t, b1_p, w2_t, b2_p, out_size=out_size)
    out = jax.block_until_ready(out)

    # bf16-matched reference (same rounding as the kernel's MXU path).
    xb = x.astype(jnp.bfloat16)
    h_bf = jnp.dot(xb, jnp.transpose(w1).astype(jnp.bfloat16),
                   preferred_element_type=jnp.float32) + b1
    z_bf = jnp.dot(h_bf.astype(jnp.bfloat16), jnp.transpose(w2).astype(jnp.bfloat16),
                   preferred_element_type=jnp.float32) + b2
    ref_bf = jax.nn.softmax(z_bf, axis=-1)

    # Pure-f32 reference (loose sanity check for the bf16 matmuls).
    ref_f32 = jax.nn.softmax((x @ w1.T + b1) @ w2.T + b2, axis=-1)

    assert out.shape == (B, O)
    assert bool(jnp.all(jnp.isfinite(out)))
    row_sums = jnp.sum(out, axis=-1)
    assert bool(jnp.all(jnp.abs(row_sums - 1.0) < 1e-3))
    assert bool(jnp.max(jnp.abs(out - ref_bf)) < 5e-3)
    assert bool(jnp.max(jnp.abs(out - ref_f32)) < 3e-2)

    print("KERNEL_OK")
</pallas_src>

<mosaic_0001>
module attributes {stable_mosaic.version = 11 : i64} {
  func.func @fasttext_kernel(%arg0: i32, %arg1: memref<8x128xbf16, #tpu.memory_space<vmem>>, %arg2: memref<128x128xbf16, #tpu.memory_space<vmem>>, %arg3: memref<1x128xf32, #tpu.memory_space<vmem>>, %arg4: memref<128x128xbf16, #tpu.memory_space<vmem>>, %arg5: memref<1x128xf32, #tpu.memory_space<vmem>>, %arg6: memref<8x128xf32, #tpu.memory_space<vmem>>) attributes {dimension_semantics = [#tpu.dimension_semantics<parallel>], iteration_bounds = array<i64: 1>, scalar_prefetch = 0 : i64, scratch_operands = 0 : i64, tpu.core_type = #tpu.core_type<tc>, window_params = [{transform_indices = @transform_0, window_bounds = array<i64: 8, 128>}, {pipeline_mode = #tpu.pipeline_mode<synchronous>, transform_indices = @transform_1, window_bounds = array<i64: 128, 128>}, {pipeline_mode = #tpu.pipeline_mode<synchronous>, transform_indices = @transform_2, window_bounds = array<i64: 1, 128>}, {pipeline_mode = #tpu.pipeline_mode<synchronous>, transform_indices = @transform_3, window_bounds = array<i64: 128, 128>}, {pipeline_mode = #tpu.pipeline_mode<synchronous>, transform_indices = @transform_4, window_bounds = array<i64: 1, 128>}, {transform_indices = @transform_5, window_bounds = array<i64: 8, 128>}]} {
    %c0 = arith.constant 0 : index
    %c0_0 = arith.constant 0 : index
    %0 = vector.load %arg1[%c0, %c0_0] : memref<8x128xbf16, #tpu.memory_space<vmem>>, vector<8x128xbf16>
    %c0_1 = arith.constant 0 : index
    %c0_2 = arith.constant 0 : index
    %1 = vector.load %arg2[%c0_1, %c0_2] : memref<128x128xbf16, #tpu.memory_space<vmem>>, vector<128x128xbf16>
    %cst = arith.constant dense<0.000000e+00> : vector<8x128xf32>
    %2 = tpu.matmul %0, %1, %cst {dimension_numbers = #tpu.dot_dimension_numbers<[1], [0], [0], [1], [0, 0, 1, 1], [], []>} : vector<8x128xbf16>, vector<128x128xbf16>, vector<8x128xf32> -> vector<8x128xf32>
    %c0_3 = arith.constant 0 : index
    %c0_4 = arith.constant 0 : index
    %3 = vector.load %arg3[%c0_3, %c0_4] : memref<1x128xf32, #tpu.memory_space<vmem>>, vector<1x128xf32>
    %4 = vector.broadcast %3 : vector<1x128xf32> to vector<8x128xf32>
    %5 = arith.addf %2, %4 : vector<8x128xf32>
    %6 = arith.truncf %5 : vector<8x128xf32> to vector<8x128xbf16>
    %c0_5 = arith.constant 0 : index
    %c0_6 = arith.constant 0 : index
    %7 = vector.load %arg4[%c0_5, %c0_6] : memref<128x128xbf16, #tpu.memory_space<vmem>>, vector<128x128xbf16>
    %cst_7 = arith.constant dense<0.000000e+00> : vector<8x128xf32>
    %8 = tpu.matmul %6, %7, %cst_7 {dimension_numbers = #tpu.dot_dimension_numbers<[1], [0], [0], [1], [0, 0, 1, 1], [], []>} : vector<8x128xbf16>, vector<128x128xbf16>, vector<8x128xf32> -> vector<8x128xf32>
    %c0_8 = arith.constant 0 : index
    %c0_9 = arith.constant 0 : index
    %9 = vector.load %arg5[%c0_8, %c0_9] : memref<1x128xf32, #tpu.memory_space<vmem>>, vector<1x128xf32>
    %10 = vector.broadcast %9 : vector<1x128xf32> to vector<8x128xf32>
    %11 = arith.addf %8, %10 : vector<8x128xf32>
    %cst_10 = arith.constant dense<0xFF800000> : vector<8xf32>
    %12 = vector.multi_reduction <maximumf>, %11, %cst_10 [1] : vector<8x128xf32> to vector<8xf32>
    %13 = vector.shape_cast %12 : vector<8xf32> to vector<8x1xf32>
    %14 = vector.broadcast %13 : vector<8x1xf32> to vector<8x128xf32>
    %15 = arith.subf %11, %14 : vector<8x128xf32>
    %16 = math.exp %15 : vector<8x128xf32>
    %cst_11 = arith.constant dense<0.000000e+00> : vector<8xf32>
    %17 = vector.multi_reduction <add>, %16, %cst_11 [1] : vector<8x128xf32> to vector<8xf32>
    %18 = vector.shape_cast %17 : vector<8xf32> to vector<8x1xf32>
    %19 = vector.broadcast %18 : vector<8x1xf32> to vector<8x128xf32>
    %20 = arith.divf %16, %19 : vector<8x128xf32>
    %c0_12 = arith.constant 0 : index
    %c0_13 = arith.constant 0 : index
    %21 = vector.load %arg6[%c0_12, %c0_13] : memref<8x128xf32, #tpu.memory_space<vmem>>, vector<8x128xf32>
    tpu.vector_store %arg6[%c0_12, %c0_13], %20 {strides = array<i32>} : memref<8x128xf32, #tpu.memory_space<vmem>>, vector<8x128xf32>,
    return
  }
  func.func @transform_0(%arg0: i32) -> (i32, i32) {
    %c0_i32 = arith.constant 0 : i32
    %c0_i32_0 = arith.constant 0 : i32
    return %arg0, %c0_i32 : i32, i32
  }
  func.func @transform_1(%arg0: i32) -> (i32, i32) {
    %c0_i32 = arith.constant 0 : i32
    %c0_i32_0 = arith.constant 0 : i32
    %c0_i32_1 = arith.constant 0 : i32
    return %c0_i32, %c0_i32_0 : i32, i32
  }
  func.func @transform_2(%arg0: i32) -> (i32, i32) {
    %c0_i32 = arith.constant 0 : i32
    %c0_i32_0 = arith.constant 0 : i32
    %c0_i32_1 = arith.constant 0 : i32
    return %c0_i32, %c0_i32_0 : i32, i32
  }
  func.func @transform_3(%arg0: i32) -> (i32, i32) {
    %c0_i32 = arith.constant 0 : i32
    %c0_i32_0 = arith.constant 0 : i32
    %c0_i32_1 = arith.constant 0 : i32
    return %c0_i32, %c0_i32_0 : i32, i32
  }
  func.func @transform_4(%arg0: i32) -> (i32, i32) {
    %c0_i32 = arith.constant 0 : i32
    %c0_i32_0 = arith.constant 0 : i32
    %c0_i32_1 = arith.constant 0 : i32
    return %c0_i32, %c0_i32_0 : i32, i32
  }
  func.func @transform_5(%arg0: i32) -> (i32, i32) {
    %c0_i32 = arith.constant 0 : i32
    %c0_i32_0 = arith.constant 0 : i32
    return %arg0, %c0_i32 : i32, i32
  }
}

module attributes {stable_mosaic.version = 11 : i64} {
  func.func @fasttext_kernel(%arg0: i32, %arg1: memref<8x128xbf16, #tpu.memory_space<vmem>>, %arg2: memref<128x128xbf16, #tpu.memory_space<vmem>>, %arg3: memref<1x128xf32, #tpu.memory_space<vmem>>, %arg4: memref<128x128xbf16, #tpu.memory_space<vmem>>, %arg5: memref<1x128xf32, #tpu.memory_space<vmem>>, %arg6: memref<8x128xf32, #tpu.memory_space<vmem>>) attributes {dimension_semantics = [#tpu.dimension_semantics<parallel>], iteration_bounds = array<i64: 1>, scalar_prefetch = 0 : i64, scratch_operands = 0 : i64, tpu.core_type = #tpu.core_type<tc>, window_params = [{transform_indices = @transform_0, window_bounds = array<i64: 8, 128>}, {pipeline_mode = #tpu.pipeline_mode<synchronous>, transform_indices = @transform_1, window_bounds = array<i64: 128, 128>}, {pipeline_mode = #tpu.pipeline_mode<synchronous>, transform_indices = @transform_2, window_bounds = array<i64: 1, 128>}, {pipeline_mode = #tpu.pipeline_mode<synchronous>, transform_indices = @transform_3, window_bounds = array<i64: 128, 128>}, {pipeline_mode = #tpu.pipeline_mode<synchronous>, transform_indices = @transform_4, window_bounds = array<i64: 1, 128>}, {transform_indices = @transform_5, window_bounds = array<i64: 8, 128>}]} {
    %c0 = arith.constant 0 : index
    %c0_0 = arith.constant 0 : index
    %0 = vector.load %arg1[%c0, %c0_0] : memref<8x128xbf16, #tpu.memory_space<vmem>>, vector<8x128xbf16>
    %c0_1 = arith.constant 0 : index
    %c0_2 = arith.constant 0 : index
    %1 = vector.load %arg2[%c0_1, %c0_2] : memref<128x128xbf16, #tpu.memory_space<vmem>>, vector<128x128xbf16>
    %cst = arith.constant dense<0.000000e+00> : vector<8x128xf32>
    %2 = tpu.matmul %0, %1, %cst {dimension_numbers = #tpu.dot_dimension_numbers<[1], [0], [0], [1], [0, 0, 1, 1], [], []>} : vector<8x128xbf16>, vector<128x128xbf16>, vector<8x128xf32> -> vector<8x128xf32>
    %c0_3 = arith.constant 0 : index
    %c0_4 = arith.constant 0 : index
    %3 = vector.load %arg3[%c0_3, %c0_4] : memref<1x128xf32, #tpu.memory_space<vmem>>, vector<1x128xf32>
    %4 = vector.broadcast %3 : vector<1x128xf32> to vector<8x128xf32>
    %5 = arith.addf %2, %4 : vector<8x128xf32>
    %6 = arith.truncf %5 : vector<8x128xf32> to vector<8x128xbf16>
    %c0_5 = arith.constant 0 : index
    %c0_6 = arith.constant 0 : index
    %7 = vector.load %arg4[%c0_5, %c0_6] : memref<128x128xbf16, #tpu.memory_space<vmem>>, vector<128x128xbf16>
    %cst_7 = arith.constant dense<0.000000e+00> : vector<8x128xf32>
    %8 = tpu.matmul %6, %7, %cst_7 {dimension_numbers = #tpu.dot_dimension_numbers<[1], [0], [0], [1], [0, 0, 1, 1], [], []>} : vector<8x128xbf16>, vector<128x128xbf16>, vector<8x128xf32> -> vector<8x128xf32>
    %c0_8 = arith.constant 0 : index
    %c0_9 = arith.constant 0 : index
    %9 = vector.load %arg5[%c0_8, %c0_9] : memref<1x128xf32, #tpu.memory_space<vmem>>, vector<1x128xf32>
    %10 = vector.broadcast %9 : vector<1x128xf32> to vector<8x128xf32>
    %11 = arith.addf %8, %10 : vector<8x128xf32>
    %cst_10 = arith.constant dense<0xFF800000> : vector<8xf32>
    %12 = vector.multi_reduction <maximumf>, %11, %cst_10 [1] : vector<8x128xf32> to vector<8xf32>
    %13 = vector.shape_cast %12 : vector<8xf32> to vector<8x1xf32>
    %14 = vector.broadcast %13 : vector<8x1xf32> to vector<8x128xf32>
    %15 = arith.subf %11, %14 : vector<8x128xf32>
    %16 = math.exp %15 : vector<8x128xf32>
    %cst_11 = arith.constant dense<0.000000e+00> : vector<8xf32>
    %17 = vector.multi_reduction <add>, %16, %cst_11 [1] : vector<8x128xf32> to vector<8xf32>
    %18 = vector.shape_cast %17 : vector<8xf32> to vector<8x1xf32>
    %19 = vector.broadcast %18 : vector<8x1xf32> to vector<8x128xf32>
    %20 = arith.divf %16, %19 : vector<8x128xf32>
    %c0_12 = arith.constant 0 : index
    %c0_13 = arith.constant 0 : index
    %21 = vector.load %arg6[%c0_12, %c0_13] : memref<8x128xf32, #tpu.memory_space<vmem>>, vector<8x128xf32>
    tpu.vector_store %arg6[%c0_12, %c0_13], %20 {strides = array<i32>} : memref<8x128xf32, #tpu.memory_space<vmem>>, vector<8x128xf32>,
    return
  }
  func.func @transform_0(%arg0: i32) -> (i32, i32) {
    %c0_i32 = arith.constant 0 : i32
    %c0_i32_0 = arith.constant 0 : i32
    return %arg0, %c0_i32 : i32, i32
  }
  func.func @transform_1(%arg0: i32) -> (i32, i32) {
    %c0_i32 = arith.constant 0 : i32
    %c0_i32_0 = arith.constant 0 : i32
    %c0_i32_1 = arith.constant 0 : i32
    return %c0_i32, %c0_i32_0 : i32, i32
  }
  func.func @transform_2(%arg0: i32) -> (i32, i32) {
    %c0_i32 = arith.constant 0 : i32
    %c0_i32_0 = arith.constant 0 : i32
    %c0_i32_1 = arith.constant 0 : i32
    return %c0_i32, %c0_i32_0 : i32, i32
  }
  func.func @transform_3(%arg0: i32) -> (i32, i32) {
    %c0_i32 = arith.constant 0 : i32
    %c0_i32_0 = arith.constant 0 : i32
    %c0_i32_1 = arith.constant 0 : i32
    return %c0_i32, %c0_i32_0 : i32, i32
  }
  func.func @transform_4(%arg0: i32) -> (i32, i32) {
    %c0_i32 = arith.constant 0 : i32
    %c0_i32_0 = arith.constant 0 : i32
    %c0_i32_1 = arith.constant 0 : i32
    return %c0_i32, %c0_i32_0 : i32, i32
  }
  func.func @transform_5(%arg0: i32) -> (i32, i32) {
    %c0_i32 = arith.constant 0 : i32
    %c0_i32_0 = arith.constant 0 : i32
    return %arg0, %c0_i32 : i32, i32
  }
}

</mosaic_0001>

<llo_original>
// kernel: _fasttext_forward_impl.1
$region0: #{_fasttext_forward_impl.1}
  #allocation0 [shape = 'u32[]', space=smem, size = 0x4, offset = 0x4, fixed_abs, tag = 'smem constant byte address 0x4 - core index']
  #allocation1 [shape = 'u32[144,128]{1,0:T(1,128)}', space=vmem, size = 0x12000, scoped, tag = 'internal scratch']
  %s0 = inlined_call_operand.vmem [shape: bf16[8,128], index: 0, kind: input, shape index: {}]
  %s1 = inlined_call_operand.hbm [shape: bf16[128,128], index: 1, kind: input, shape index: {}]
  %s2 = inlined_call_operand.vmem [shape: f32[1,128], index: 2, kind: input, shape index: {}]
  %s3 = inlined_call_operand.hbm [shape: bf16[128,128], index: 3, kind: input, shape index: {}]
  %s4 = inlined_call_operand.vmem [shape: f32[1,128], index: 4, kind: input, shape index: {}]
  %s5 = inlined_call_operand.hbm [shape: f32[8,128], index: 5, kind: output, shape index: {}]
  %s6 = sld [smem:[#allocation0]]
  $region38: #{_fasttext_forward_impl.1} parent=0
    _
  %s8 = ssub.s32 1, %s6
  %s9 = scalar_select 0, %s8, %s6
  $region1: #{_fasttext_forward_impl.1} parent=0
    #allocation2 [shape = 'u8[32768]{0}', space=vmem, size = 0x8000, scoped, tag = 'input window, operand 1, single buffered']
    #allocation3 [shape = 's32[1]{0}', space=sflag, size = 0x4, scoped, tag = 'scoped memory for _fasttext_forward_impl.1']
    #allocation4 [shape = 's32[1]{0}', space=sflag, size = 0x4, scoped, tag = 'scoped memory for _fasttext_forward_impl.1']
    #allocation5 [shape = 'u8[32768]{0}', space=vmem, size = 0x8000, scoped, tag = 'input window, operand 3, single buffered']
    #allocation6 [shape = 's32[1]{0}', space=sflag, size = 0x4, scoped, tag = 'scoped memory for _fasttext_forward_impl.1']
    #allocation7 [shape = 'u8[4096]{0}', space=vmem, size = 0x1000, scoped, tag = 'output window, operand 0, single buffered']
    %10 = vsyncpa [#allocation3], 0
    %11 = vsyncpa [#allocation6], 0
    %12 = vsyncpa [#allocation4], 0
    // Predicated region
    $region2: #{_fasttext_forward_impl.1} parent=1 // pred_check
      _
    $region3: #{_fasttext_forward_impl.1} parent=1 // pred_check_branch
      %14 = sbr.rel (0) target = $region5
    $region4: #{_fasttext_forward_impl.1} parent=1 // pred_region
      _
    $region5: #{_fasttext_forward_impl.1} parent=1 // pred_fallthru
      _
    // Predicated region
    $region6: #{_fasttext_forward_impl.1} parent=1 // pred_check
      _
    $region7: #{_fasttext_forward_impl.1} parent=1 // pred_check_branch
      %16 = sbr.rel (0) target = $region9
    $region8: #{_fasttext_forward_impl.1} parent=1 // pred_region
      %s18 = ssub.s32 1024, 1024
      %19 = vsyncadd [#allocation3], %s18
      %s20 = sshll.u32 [#allocation2], 4
      %s21 = int_to_ptr.vmem [resolvable:$true] %s20
      %26 = dma.hbm_to_vmem [thread:$0]  %s1, 1024, %s21, [#allocation3], 64, 64, 4
    $region9: #{_fasttext_forward_impl.1} parent=1 // pred_fallthru
      _
    // Predicated region
    $region10: #{_fasttext_forward_impl.1} parent=1 // pred_check
      _
    $region11: #{_fasttext_forward_impl.1} parent=1 // pred_check_branch
      %28 = sbr.rel (0) target = $region13
    $region12: #{_fasttext_forward_impl.1} parent=1 // pred_region
      _
    $region13: #{_fasttext_forward_impl.1} parent=1 // pred_fallthru
      _
    // Predicated region
    $region14: #{_fasttext_forward_impl.1} parent=1 // pred_check
      _
    $region15: #{_fasttext_forward_impl.1} parent=1 // pred_check_branch
      %30 = sbr.rel (0) target = $region17
    $region16: #{_fasttext_forward_impl.1} parent=1 // pred_region
      %s32 = ssub.s32 1024, 1024
      %33 = vsyncadd [#allocation6], %s32
      %s34 = sshll.u32 [#allocation5], 4
      %s35 = int_to_ptr.vmem [resolvable:$true] %s34
      %40 = dma.hbm_to_vmem [thread:$0]  %s3, 1024, %s35, [#allocation6], 64, 64, 4
    $region17: #{_fasttext_forward_impl.1} parent=1 // pred_fallthru
      _
    // Predicated region
    $region18: #{_fasttext_forward_impl.1} parent=1 // pred_check
      _
    $region19: #{_fasttext_forward_impl.1} parent=1 // pred_check_branch
      %42 = sbr.rel (0) target = $region21
    $region20: #{_fasttext_forward_impl.1} parent=1 // pred_region
      _
    $region21: #{_fasttext_forward_impl.1} parent=1 // pred_fallthru
      _
    // Predicated region
    $region22: #{_fasttext_forward_impl.1} parent=1 // pred_check
      _
    $region23: #{_fasttext_forward_impl.1} parent=1 // pred_check_branch
      %44 = sbr.rel (0) target = $region25
    $region24: #{_fasttext_forward_impl.1} parent=1 // pred_region
      %45 = dma.done [#allocation3], 1024
    $region25: #{_fasttext_forward_impl.1} parent=1 // pred_fallthru
      _
    // Predicated region
    $region26: #{_fasttext_forward_impl.1} parent=1 // pred_check
      _
    $region27: #{_fasttext_forward_impl.1} parent=1 // pred_check_branch
      %47 = sbr.rel (0) target = $region29
    $region28: #{_fasttext_forward_impl.1} parent=1 // pred_region
      %48 = dma.done [#allocation6], 1024
    $region29: #{_fasttext_forward_impl.1} parent=1 // pred_fallthru
      _
    %v50 = vld [vmem:[%s0] sm:$0xf]
    %v51 = vld [vmem:[#allocation2] sm:$0xf]
    %v52 = vld [vmem:[#allocation2 + $0x4] sm:$0xf]
    %v53 = vld [vmem:[#allocation2 + $0x8] sm:$0xf]
    %v54 = vld [vmem:[#allocation2 + $0xc] sm:$0xf]
    %v55 = vld [vmem:[#allocation2 + $0x10] sm:$0xf]
    %v56 = vld [vmem:[#allocation2 + $0x14] sm:$0xf]
    %v57 = vld [vmem:[#allocation2 + $0x18] sm:$0xf]
    %v58 = vld [vmem:[#allocation2 + $0x1c] sm:$0xf]
    %v59 = vld [vmem:[#allocation2 + $0x20] sm:$0xf]
    %v60 = vld [vmem:[#allocation2 + $0x24] sm:$0xf]
    %v61 = vld [vmem:[#allocation2 + $0x28] sm:$0xf]
    %v62 = vld [vmem:[#allocation2 + $0x2c] sm:$0xf]
    %v63 = vld [vmem:[#allocation2 + $0x30] sm:$0xf]
    %v64 = vld [vmem:[#allocation2 + $0x34] sm:$0xf]
    %v65 = vld [vmem:[#allocation2 + $0x38] sm:$0xf]
    %v66 = vld [vmem:[#allocation2 + $0x3c] sm:$0xf]
    %v67 = vld [vmem:[%s2] sm:$0x1]
    %v69 = vlaneseq
    %v70 = vshrl.u32 %v69, 7
    %v71 = vsub.s32 0, %v70
    %v72 = vrot.slane %v67, %v71
    %v90 = vunpack.c.l.b16 %v51
    %v91 = vunpack.c.l.b16 %v52
    %v92 = vunpack.c.l.b16 %v53
    %v93 = vunpack.c.l.b16 %v54
    %v94 = vunpack.c.l.b16 %v55
    %v95 = vunpack.c.l.b16 %v56
    %v96 = vunpack.c.l.b16 %v57
    %v97 = vunpack.c.l.b16 %v58
    %v98 = vunpack.c.l.b16 %v59
    %v99 = vunpack.c.l.b16 %v60
    %v100 = vunpack.c.l.b16 %v61
    %v101 = vunpack.c.l.b16 %v62
    %v102 = vunpack.c.l.b16 %v63
    %v103 = vunpack.c.l.b16 %v64
    %v104 = vunpack.c.l.b16 %v65
    %v105 = vunpack.c.l.b16 %v66
    %v106 = vpack.c.b16 %v91, %v90
    %v107 = vpack.c.b16 %v93, %v92
    %v108 = vpack.c.b16 %v95, %v94
    %v109 = vpack.c.b16 %v97, %v96
    %v110 = vpack.c.b16 %v99, %v98
    %v111 = vpack.c.b16 %v101, %v100
    %v112 = vpack.c.b16 %v103, %v102
    %v113 = vpack.c.b16 %v105, %v104
    %122 = vmatprep.subr.bf16.mxu0 0
    %123 = vmatpush1.bf16.msra.mxu0 %v106
    %124 = vmatprep.subr.bf16.mxu0 0
    %125 = vmatpush1.bf16.msra.mxu0 %v107
    %126 = vmatprep.subr.bf16.mxu0 0
    %127 = vmatpush1.bf16.msra.mxu0 %v108
    %128 = vmatprep.subr.bf16.mxu0 0
    %129 = vmatpush1.bf16.msra.mxu0 %v109
    %130 = vmatprep.subr.bf16.mxu0 0
    %131 = vmatpush1.bf16.msra.mxu0 %v110
    %132 = vmatprep.subr.bf16.mxu0 0
    %133 = vmatpush1.bf16.msra.mxu0 %v111
    %134 = vmatprep.subr.bf16.mxu0 0
    %135 = vmatpush1.bf16.msra.mxu0 %v112
    %136 = vmatprep.subr.bf16.mxu0 0
    %137 = vmatpush1.bf16.msra.mxu0 %v113
    %138 = vmatprep.subr.bf16.mxu0 0
    %139 = vmatpush1.bf16.msra.mxu0 0
    %140 = vmatprep.subr.bf16.mxu0 0
    %141 = vmatpush1.bf16.msra.mxu0 0
    %142 = vmatprep.subr.bf16.mxu0 0
    %143 = vmatpush1.bf16.msra.mxu0 0
    %144 = vmatprep.subr.bf16.mxu0 0
    %145 = vmatpush1.bf16.msra.mxu0 0
    %146 = vmatprep.subr.bf16.mxu0 0
    %147 = vmatpush1.bf16.msra.mxu0 0
    %148 = vmatprep.subr.bf16.mxu0 0
    %149 = vmatpush1.bf16.msra.mxu0 0
    %150 = vmatprep.subr.bf16.mxu0 0
    %151 = vmatpush1.bf16.msra.mxu0 0
    %152 = vmatprep.subr.bf16.mxu0 0
    %153 = vmatpush1.bf16.msra.mxu0 0
    %154 = vmatprep.mubr.bf16.mxu0 0
    %155 = vmatmul.mubr.bf16.gmra.mrb[0].mxu0 %v50
    %v156 = vpop.f32.mrb[0].mxu0
    %v157 = vadd.f32 %v72, %v156
    %v158 = vpop.f32.mrb[0].mxu0
    %v159 = vpop.f32.mrb[0].mxu0
    %v160 = vpop.f32.mrb[0].mxu0
    %161 = vdwg.mxu0
    %v162 = vpack.c.bf16 %v157, %v157
    %v163 = vld [vmem:[#allocation5] sm:$0xf]
    %v164 = vld [vmem:[#allocation5 + $0x4] sm:$0xf]
    %v165 = vld [vmem:[#allocation5 + $0x8] sm:$0xf]
    %v166 = vld [vmem:[#allocation5 + $0xc] sm:$0xf]
    %v167 = vld [vmem:[#allocation5 + $0x10] sm:$0xf]
    %v168 = vld [vmem:[#allocation5 + $0x14] sm:$0xf]
    %v169 = vld [vmem:[#allocation5 + $0x18] sm:$0xf]
    %v170 = vld [vmem:[#allocation5 + $0x1c] sm:$0xf]
    %v171 = vld [vmem:[#allocation5 + $0x20] sm:$0xf]
    %v172 = vld [vmem:[#allocation5 + $0x24] sm:$0xf]
    %v173 = vld [vmem:[#allocation5 + $0x28] sm:$0xf]
    %v174 = vld [vmem:[#allocation5 + $0x2c] sm:$0xf]
    %v175 = vld [vmem:[#allocation5 + $0x30] sm:$0xf]
    %v176 = vld [vmem:[#allocation5 + $0x34] sm:$0xf]
    %v177 = vld [vmem:[#allocation5 + $0x38] sm:$0xf]
    %v178 = vld [vmem:[#allocation5 + $0x3c] sm:$0xf]
    %v179 = vld [vmem:[%s4] sm:$0x1]
    %v181 = vlaneseq
    %v182 = vshrl.u32 %v181, 7
    %v183 = vsub.s32 0, %v182
    %v184 = vrot.slane %v179, %v183
    %v202 = vunpack.c.l.b16 %v163
    %v203 = vunpack.c.l.b16 %v164
    %v204 = vunpack.c.l.b16 %v165
    %v205 = vunpack.c.l.b16 %v166
    %v206 = vunpack.c.l.b16 %v167
    %v207 = vunpack.c.l.b16 %v168
    %v208 = vunpack.c.l.b16 %v169
    %v209 = vunpack.c.l.b16 %v170
    %v210 = vunpack.c.l.b16 %v171
    %v211 = vunpack.c.l.b16 %v172
    %v212 = vunpack.c.l.b16 %v173
    %v213 = vunpack.c.l.b16 %v174
    %v214 = vunpack.c.l.b16 %v175
    %v215 = vunpack.c.l.b16 %v176
    %v216 = vunpack.c.l.b16 %v177
    %v217 = vunpack.c.l.b16 %v178
    %v218 = vpack.c.b16 %v203, %v202
    %v219 = vpack.c.b16 %v205, %v204
    %v220 = vpack.c.b16 %v207, %v206
    %v221 = vpack.c.b16 %v209, %v208
    %v222 = vpack.c.b16 %v211, %v210
    %v223 = vpack.c.b16 %v213, %v212
    %v224 = vpack.c.b16 %v215, %v214
    %v225 = vpack.c.b16 %v217, %v216
    %234 = vmatprep.subr.bf16.mxu0 0
    %235 = vmatpush1.bf16.msra.mxu0 %v218
    %236 = vmatprep.subr.bf16.mxu0 0
    %237 = vmatpush1.bf16.msra.mxu0 %v219
    %238 = vmatprep.subr.bf16.mxu0 0
    %239 = vmatpush1.bf16.msra.mxu0 %v220
    %240 = vmatprep.subr.bf16.mxu0 0
    %241 = vmatpush1.bf16.msra.mxu0 %v221
    %242 = vmatprep.subr.bf16.mxu0 0
    %243 = vmatpush1.bf16.msra.mxu0 %v222
    %244 = vmatprep.subr.bf16.mxu0 0
    %245 = vmatpush1.bf16.msra.mxu0 %v223
    %246 = vmatprep.subr.bf16.mxu0 0
    %247 = vmatpush1.bf16.msra.mxu0 %v224
    %248 = vmatprep.subr.bf16.mxu0 0
    %249 = vmatpush1.bf16.msra.mxu0 %v225
    %250 = vmatprep.subr.bf16.mxu0 0
    %251 = vmatpush1.bf16.msra.mxu0 0
    %252 = vmatprep.subr.bf16.mxu0 0
    %253 = vmatpush1.bf16.msra.mxu0 0
    %254 = vmatprep.subr.bf16.mxu0 0
    %255 = vmatpush1.bf16.msra.mxu0 0
    %256 = vmatprep.subr.bf16.mxu0 0
    %257 = vmatpush1.bf16.msra.mxu0 0
    %258 = vmatprep.subr.bf16.mxu0 0
    %259 = vmatpush1.bf16.msra.mxu0 0
    %260 = vmatprep.subr.bf16.mxu0 0
    %261 = vmatpush1.bf16.msra.mxu0 0
    %262 = vmatprep.subr.bf16.mxu0 0
    %263 = vmatpush1.bf16.msra.mxu0 0
    %264 = vmatprep.subr.bf16.mxu0 0
    %265 = vmatpush1.bf16.msra.mxu0 0
    %266 = vmatprep.mubr.bf16.mxu0 0
    %267 = vmatmul.mubr.bf16.gmra.mrb[0].mxu0 %v162
    %v268 = vpop.f32.mrb[0].mxu0
    %v269 = vadd.f32 %v184, %v268
    %v270 = vpop.f32.mrb[0].mxu0
    %v271 = vpop.f32.mrb[0].mxu0
    %v272 = vpop.f32.mrb[0].mxu0
    %273 = vdwg.mxu0
    %274 = vmax.xlane.f32.xlu0 %v269
    %v275 = vpop.xlane.xlu0 %274
    %v276 = vsub.f32 %v269, %v275
    %v277 = vmul.f32 %v276, 1.442695
    %v278 = vpow.pop %v277
    %279 = vadd.xlane.f32.xlu0 %v278
    %v280 = vpop.xlane.xlu0 %279
    %v281 = vrcp.pop %v280
    %v282 = vmul.f32 %v278, %v281
    %283 = vst [vmem:[#allocation7] sm:$0xff] %v282
    // Predicated region
    $region30: #{_fasttext_forward_impl.1} parent=1 // pred_check
      _
    $region31: #{_fasttext_forward_impl.1} parent=1 // pred_check_branch
      %285 = sbr.rel (0) target = $region33
    $region32: #{_fasttext_forward_impl.1} parent=1 // pred_region
      %s287 = ssub.s32 128, 128
      %288 = vsyncadd [#allocation4], %s287
      %s290 = sshll.u32 [#allocation7], 4
      %s291 = int_to_ptr.vmem [resolvable:$true] %s290
      %293 = dma.vmem_to_hbm [thread:$0]  %s291, 128, %s5, [#allocation4]
    $region33: #{_fasttext_forward_impl.1} parent=1 // pred_fallthru
      _
    // Predicated region
    $region34: #{_fasttext_forward_impl.1} parent=1 // pred_check
      _
    $region35: #{_fasttext_forward_impl.1} parent=1 // pred_check_branch
      %295 = sbr.rel (0) target = $region37
    $region36: #{_fasttext_forward_impl.1} parent=1 // pred_region
      %296 = dma.done [#allocation4], 128
    $region37: #{_fasttext_forward_impl.1} parent=1 // pred_fallthru
      _
    %297 = vsyncpa [#allocation3], 1
    %298 = vsyncpa [#allocation6], 1
    %299 = vsyncpa [#allocation4], 1

// kernel: _fasttext_forward_impl.1
$region0: #{_fasttext_forward_impl.1}
  #allocation0 [shape = 'u32[]', space=smem, size = 0x4, offset = 0x4, fixed_abs, tag = 'smem constant byte address 0x4 - core index']
  #allocation1 [shape = 'u32[144,128]{1,0:T(1,128)}', space=vmem, size = 0x12000, scoped, tag = 'internal scratch']
  %s0 = inlined_call_operand.vmem [shape: bf16[8,128], index: 0, kind: input, shape index: {}]
  %s1 = inlined_call_operand.hbm [shape: bf16[128,128], index: 1, kind: input, shape index: {}]
  %s2 = inlined_call_operand.vmem [shape: f32[1,128], index: 2, kind: input, shape index: {}]
  %s3 = inlined_call_operand.hbm [shape: bf16[128,128], index: 3, kind: input, shape index: {}]
  %s4 = inlined_call_operand.vmem [shape: f32[1,128], index: 4, kind: input, shape index: {}]
  %s5 = inlined_call_operand.hbm [shape: f32[8,128], index: 5, kind: output, shape index: {}]
  %s6 = sld [smem:[#allocation0]]
  $region38: #{_fasttext_forward_impl.1} parent=0
    _
  %s8 = ssub.s32 1, %s6
  %s9 = scalar_select 0, %s8, %s6
  $region1: #{_fasttext_forward_impl.1} parent=0
    #allocation2 [shape = 'u8[32768]{0}', space=vmem, size = 0x8000, scoped, tag = 'input window, operand 1, single buffered']
    #allocation3 [shape = 's32[1]{0}', space=sflag, size = 0x4, scoped, tag = 'scoped memory for _fasttext_forward_impl.1']
    #allocation4 [shape = 's32[1]{0}', space=sflag, size = 0x4, scoped, tag = 'scoped memory for _fasttext_forward_impl.1']
    #allocation5 [shape = 'u8[32768]{0}', space=vmem, size = 0x8000, scoped, tag = 'input window, operand 3, single buffered']
    #allocation6 [shape = 's32[1]{0}', space=sflag, size = 0x4, scoped, tag = 'scoped memory for _fasttext_forward_impl.1']
    #allocation7 [shape = 'u8[4096]{0}', space=vmem, size = 0x1000, scoped, tag = 'output window, operand 0, single buffered']
    %10 = vsyncpa [#allocation3], 0
    %11 = vsyncpa [#allocation6], 0
    %12 = vsyncpa [#allocation4], 0
    // Predicated region
    $region2: #{_fasttext_forward_impl.1} parent=1 // pred_check
      _
    $region3: #{_fasttext_forward_impl.1} parent=1 // pred_check_branch
      %14 = sbr.rel (0) target = $region5
    $region4: #{_fasttext_forward_impl.1} parent=1 // pred_region
      _
    $region5: #{_fasttext_forward_impl.1} parent=1 // pred_fallthru
      _
    // Predicated region
    $region6: #{_fasttext_forward_impl.1} parent=1 // pred_check
      _
    $region7: #{_fasttext_forward_impl.1} parent=1 // pred_check_branch
      %16 = sbr.rel (0) target = $region9
    $region8: #{_fasttext_forward_impl.1} parent=1 // pred_region
      %s18 = ssub.s32 1024, 1024
      %19 = vsyncadd [#allocation3], %s18
      %s20 = sshll.u32 [#allocation2], 4
      %s21 = int_to_ptr.vmem [resolvable:$true] %s20
      %26 = dma.hbm_to_vmem [thread:$0]  %s1, 1024, %s21, [#allocation3], 64, 64, 4
    $region9: #{_fasttext_forward_impl.1} parent=1 // pred_fallthru
      _
    // Predicated region
    $region10: #{_fasttext_forward_impl.1} parent=1 // pred_check
      _
    $region11: #{_fasttext_forward_impl.1} parent=1 // pred_check_branch
      %28 = sbr.rel (0) target = $region13
    $region12: #{_fasttext_forward_impl.1} parent=1 // pred_region
      _
    $region13: #{_fasttext_forward_impl.1} parent=1 // pred_fallthru
      _
    // Predicated region
    $region14: #{_fasttext_forward_impl.1} parent=1 // pred_check
      _
    $region15: #{_fasttext_forward_impl.1} parent=1 // pred_check_branch
      %30 = sbr.rel (0) target = $region17
    $region16: #{_fasttext_forward_impl.1} parent=1 // pred_region
      %s32 = ssub.s32 1024, 1024
      %33 = vsyncadd [#allocation6], %s32
      %s34 = sshll.u32 [#allocation5], 4
      %s35 = int_to_ptr.vmem [resolvable:$true] %s34
      %40 = dma.hbm_to_vmem [thread:$0]  %s3, 1024, %s35, [#allocation6], 64, 64, 4
    $region17: #{_fasttext_forward_impl.1} parent=1 // pred_fallthru
      _
    // Predicated region
    $region18: #{_fasttext_forward_impl.1} parent=1 // pred_check
      _
    $region19: #{_fasttext_forward_impl.1} parent=1 // pred_check_branch
      %42 = sbr.rel (0) target = $region21
    $region20: #{_fasttext_forward_impl.1} parent=1 // pred_region
      _
    $region21: #{_fasttext_forward_impl.1} parent=1 // pred_fallthru
      _
    // Predicated region
    $region22: #{_fasttext_forward_impl.1} parent=1 // pred_check
      _
    $region23: #{_fasttext_forward_impl.1} parent=1 // pred_check_branch
      %44 = sbr.rel (0) target = $region25
    $region24: #{_fasttext_forward_impl.1} parent=1 // pred_region
      %45 = dma.done [#allocation3], 1024
    $region25: #{_fasttext_forward_impl.1} parent=1 // pred_fallthru
      _
    // Predicated region
    $region26: #{_fasttext_forward_impl.1} parent=1 // pred_check
      _
    $region27: #{_fasttext_forward_impl.1} parent=1 // pred_check_branch
      %47 = sbr.rel (0) target = $region29
    $region28: #{_fasttext_forward_impl.1} parent=1 // pred_region
      %48 = dma.done [#allocation6], 1024
    $region29: #{_fasttext_forward_impl.1} parent=1 // pred_fallthru
      _
    %v50 = vld [vmem:[%s0] sm:$0xf]
    %v51 = vld [vmem:[#allocation2] sm:$0xf]
    %v52 = vld [vmem:[#allocation2 + $0x4] sm:$0xf]
    %v53 = vld [vmem:[#allocation2 + $0x8] sm:$0xf]
    %v54 = vld [vmem:[#allocation2 + $0xc] sm:$0xf]
    %v55 = vld [vmem:[#allocation2 + $0x10] sm:$0xf]
    %v56 = vld [vmem:[#allocation2 + $0x14] sm:$0xf]
    %v57 = vld [vmem:[#allocation2 + $0x18] sm:$0xf]
    %v58 = vld [vmem:[#allocation2 + $0x1c] sm:$0xf]
    %v59 = vld [vmem:[#allocation2 + $0x20] sm:$0xf]
    %v60 = vld [vmem:[#allocation2 + $0x24] sm:$0xf]
    %v61 = vld [vmem:[#allocation2 + $0x28] sm:$0xf]
    %v62 = vld [vmem:[#allocation2 + $0x2c] sm:$0xf]
    %v63 = vld [vmem:[#allocation2 + $0x30] sm:$0xf]
    %v64 = vld [vmem:[#allocation2 + $0x34] sm:$0xf]
    %v65 = vld [vmem:[#allocation2 + $0x38] sm:$0xf]
    %v66 = vld [vmem:[#allocation2 + $0x3c] sm:$0xf]
    %v67 = vld [vmem:[%s2] sm:$0x1]
    %v69 = vlaneseq
    %v70 = vshrl.u32 %v69, 7
    %v71 = vsub.s32 0, %v70
    %v72 = vrot.slane %v67, %v71
    %v90 = vunpack.c.l.b16 %v51
    %v91 = vunpack.c.l.b16 %v52
    %v92 = vunpack.c.l.b16 %v53
    %v93 = vunpack.c.l.b16 %v54
    %v94 = vunpack.c.l.b16 %v55
    %v95 = vunpack.c.l.b16 %v56
    %v96 = vunpack.c.l.b16 %v57
    %v97 = vunpack.c.l.b16 %v58
    %v98 = vunpack.c.l.b16 %v59
    %v99 = vunpack.c.l.b16 %v60
    %v100 = vunpack.c.l.b16 %v61
    %v101 = vunpack.c.l.b16 %v62
    %v102 = vunpack.c.l.b16 %v63
    %v103 = vunpack.c.l.b16 %v64
    %v104 = vunpack.c.l.b16 %v65
    %v105 = vunpack.c.l.b16 %v66
    %v106 = vpack.c.b16 %v91, %v90
    %v107 = vpack.c.b16 %v93, %v92
    %v108 = vpack.c.b16 %v95, %v94
    %v109 = vpack.c.b16 %v97, %v96
    %v110 = vpack.c.b16 %v99, %v98
    %v111 = vpack.c.b16 %v101, %v100
    %v112 = vpack.c.b16 %v103, %v102
    %v113 = vpack.c.b16 %v105, %v104
    %122 = vmatprep.subr.bf16.mxu0 0
    %123 = vmatpush1.bf16.msra.mxu0 %v106
    %124 = vmatprep.subr.bf16.mxu0 0
    %125 = vmatpush1.bf16.msra.mxu0 %v107
    %126 = vmatprep.subr.bf16.mxu0 0
    %127 = vmatpush1.bf16.msra.mxu0 %v108
    %128 = vmatprep.subr.bf16.mxu0 0
    %129 = vmatpush1.bf16.msra.mxu0 %v109
    %130 = vmatprep.subr.bf16.mxu0 0
    %131 = vmatpush1.bf16.msra.mxu0 %v110
    %132 = vmatprep.subr.bf16.mxu0 0
    %133 = vmatpush1.bf16.msra.mxu0 %v111
    %134 = vmatprep.subr.bf16.mxu0 0
    %135 = vmatpush1.bf16.msra.mxu0 %v112
    %136 = vmatprep.subr.bf16.mxu0 0
    %137 = vmatpush1.bf16.msra.mxu0 %v113
    %138 = vmatprep.subr.bf16.mxu0 0
    %139 = vmatpush1.bf16.msra.mxu0 0
    %140 = vmatprep.subr.bf16.mxu0 0
    %141 = vmatpush1.bf16.msra.mxu0 0
    %142 = vmatprep.subr.bf16.mxu0 0
    %143 = vmatpush1.bf16.msra.mxu0 0
    %144 = vmatprep.subr.bf16.mxu0 0
    %145 = vmatpush1.bf16.msra.mxu0 0
    %146 = vmatprep.subr.bf16.mxu0 0
    %147 = vmatpush1.bf16.msra.mxu0 0
    %148 = vmatprep.subr.bf16.mxu0 0
    %149 = vmatpush1.bf16.msra.mxu0 0
    %150 = vmatprep.subr.bf16.mxu0 0
    %151 = vmatpush1.bf16.msra.mxu0 0
    %152 = vmatprep.subr.bf16.mxu0 0
    %153 = vmatpush1.bf16.msra.mxu0 0
    %154 = vmatprep.mubr.bf16.mxu0 0
    %155 = vmatmul.mubr.bf16.gmra.mrb[0].mxu0 %v50
    %v156 = vpop.f32.mrb[0].mxu0
    %v157 = vadd.f32 %v72, %v156
    %v158 = vpop.f32.mrb[0].mxu0
    %v159 = vpop.f32.mrb[0].mxu0
    %v160 = vpop.f32.mrb[0].mxu0
    %161 = vdwg.mxu0
    %v162 = vpack.c.bf16 %v157, %v157
    %v163 = vld [vmem:[#allocation5] sm:$0xf]
    %v164 = vld [vmem:[#allocation5 + $0x4] sm:$0xf]
    %v165 = vld [vmem:[#allocation5 + $0x8] sm:$0xf]
    %v166 = vld [vmem:[#allocation5 + $0xc] sm:$0xf]
    %v167 = vld [vmem:[#allocation5 + $0x10] sm:$0xf]
    %v168 = vld [vmem:[#allocation5 + $0x14] sm:$0xf]
    %v169 = vld [vmem:[#allocation5 + $0x18] sm:$0xf]
    %v170 = vld [vmem:[#allocation5 + $0x1c] sm:$0xf]
    %v171 = vld [vmem:[#allocation5 + $0x20] sm:$0xf]
    %v172 = vld [vmem:[#allocation5 + $0x24] sm:$0xf]
    %v173 = vld [vmem:[#allocation5 + $0x28] sm:$0xf]
    %v174 = vld [vmem:[#allocation5 + $0x2c] sm:$0xf]
    %v175 = vld [vmem:[#allocation5 + $0x30] sm:$0xf]
    %v176 = vld [vmem:[#allocation5 + $0x34] sm:$0xf]
    %v177 = vld [vmem:[#allocation5 + $0x38] sm:$0xf]
    %v178 = vld [vmem:[#allocation5 + $0x3c] sm:$0xf]
    %v179 = vld [vmem:[%s4] sm:$0x1]
    %v181 = vlaneseq
    %v182 = vshrl.u32 %v181, 7
    %v183 = vsub.s32 0, %v182
    %v184 = vrot.slane %v179, %v183
    %v202 = vunpack.c.l.b16 %v163
    %v203 = vunpack.c.l.b16 %v164
    %v204 = vunpack.c.l.b16 %v165
    %v205 = vunpack.c.l.b16 %v166
    %v206 = vunpack.c.l.b16 %v167
    %v207 = vunpack.c.l.b16 %v168
    %v208 = vunpack.c.l.b16 %v169
    %v209 = vunpack.c.l.b16 %v170
    %v210 = vunpack.c.l.b16 %v171
    %v211 = vunpack.c.l.b16 %v172
    %v212 = vunpack.c.l.b16 %v173
    %v213 = vunpack.c.l.b16 %v174
    %v214 = vunpack.c.l.b16 %v175
    %v215 = vunpack.c.l.b16 %v176
    %v216 = vunpack.c.l.b16 %v177
    %v217 = vunpack.c.l.b16 %v178
    %v218 = vpack.c.b16 %v203, %v202
    %v219 = vpack.c.b16 %v205, %v204
    %v220 = vpack.c.b16 %v207, %v206
    %v221 = vpack.c.b16 %v209, %v208
    %v222 = vpack.c.b16 %v211, %v210
    %v223 = vpack.c.b16 %v213, %v212
    %v224 = vpack.c.b16 %v215, %v214
    %v225 = vpack.c.b16 %v217, %v216
    %234 = vmatprep.subr.bf16.mxu0 0
    %235 = vmatpush1.bf16.msra.mxu0 %v218
    %236 = vmatprep.subr.bf16.mxu0 0
    %237 = vmatpush1.bf16.msra.mxu0 %v219
    %238 = vmatprep.subr.bf16.mxu0 0
    %239 = vmatpush1.bf16.msra.mxu0 %v220
    %240 = vmatprep.subr.bf16.mxu0 0
    %241 = vmatpush1.bf16.msra.mxu0 %v221
    %242 = vmatprep.subr.bf16.mxu0 0
    %243 = vmatpush1.bf16.msra.mxu0 %v222
    %244 = vmatprep.subr.bf16.mxu0 0
    %245 = vmatpush1.bf16.msra.mxu0 %v223
    %246 = vmatprep.subr.bf16.mxu0 0
    %247 = vmatpush1.bf16.msra.mxu0 %v224
    %248 = vmatprep.subr.bf16.mxu0 0
    %249 = vmatpush1.bf16.msra.mxu0 %v225
    %250 = vmatprep.subr.bf16.mxu0 0
    %251 = vmatpush1.bf16.msra.mxu0 0
    %252 = vmatprep.subr.bf16.mxu0 0
    %253 = vmatpush1.bf16.msra.mxu0 0
    %254 = vmatprep.subr.bf16.mxu0 0
    %255 = vmatpush1.bf16.msra.mxu0 0
    %256 = vmatprep.subr.bf16.mxu0 0
    %257 = vmatpush1.bf16.msra.mxu0 0
    %258 = vmatprep.subr.bf16.mxu0 0
    %259 = vmatpush1.bf16.msra.mxu0 0
    %260 = vmatprep.subr.bf16.mxu0 0
    %261 = vmatpush1.bf16.msra.mxu0 0
    %262 = vmatprep.subr.bf16.mxu0 0
    %263 = vmatpush1.bf16.msra.mxu0 0
    %264 = vmatprep.subr.bf16.mxu0 0
    %265 = vmatpush1.bf16.msra.mxu0 0
    %266 = vmatprep.mubr.bf16.mxu0 0
    %267 = vmatmul.mubr.bf16.gmra.mrb[0].mxu0 %v162
    %v268 = vpop.f32.mrb[0].mxu0
    %v269 = vadd.f32 %v184, %v268
    %v270 = vpop.f32.mrb[0].mxu0
    %v271 = vpop.f32.mrb[0].mxu0
    %v272 = vpop.f32.mrb[0].mxu0
    %273 = vdwg.mxu0
    %274 = vmax.xlane.f32.xlu0 %v269
    %v275 = vpop.xlane.xlu0 %274
    %v276 = vsub.f32 %v269, %v275
    %v277 = vmul.f32 %v276, 1.442695
    %v278 = vpow.pop %v277
    %279 = vadd.xlane.f32.xlu0 %v278
    %v280 = vpop.xlane.xlu0 %279
    %v281 = vrcp.pop %v280
    %v282 = vmul.f32 %v278, %v281
    %283 = vst [vmem:[#allocation7] sm:$0xff] %v282
    // Predicated region
    $region30: #{_fasttext_forward_impl.1} parent=1 // pred_check
      _
    $region31: #{_fasttext_forward_impl.1} parent=1 // pred_check_branch
      %285 = sbr.rel (0) target = $region33
    $region32: #{_fasttext_forward_impl.1} parent=1 // pred_region
      %s287 = ssub.s32 128, 128
      %288 = vsyncadd [#allocation4], %s287
      %s290 = sshll.u32 [#allocation7], 4
      %s291 = int_to_ptr.vmem [resolvable:$true] %s290
      %293 = dma.vmem_to_hbm [thread:$0]  %s291, 128, %s5, [#allocation4]
    $region33: #{_fasttext_forward_impl.1} parent=1 // pred_fallthru
      _
    // Predicated region
    $region34: #{_fasttext_forward_impl.1} parent=1 // pred_check
      _
    $region35: #{_fasttext_forward_impl.1} parent=1 // pred_check_branch
      %295 = sbr.rel (0) target = $region37
    $region36: #{_fasttext_forward_impl.1} parent=1 // pred_region
      %296 = dma.done [#allocation4], 128
    $region37: #{_fasttext_forward_impl.1} parent=1 // pred_fallthru
      _
    %297 = vsyncpa [#allocation3], 1
    %298 = vsyncpa [#allocation6], 1
    %299 = vsyncpa [#allocation4], 1

</llo_original>
